<compile_context>
chip_gen: v7x
topology: tpu7x:2x2x1
jax: 0.10.0
libtpu: 0.0.40
codegen_flags: <defaults>
</compile_context>

<pallas_src>
import jax
import jax.numpy as jnp
from jax import lax
from jax.experimental import pallas as pl
from jax.experimental.pallas import tpu as pltpu

STATE_DIM = 4
HIDDEN = 8
N_ACTIONS = 2

# ----------------------------------------------------------------------------
# Parameter slab layout, (8, 128) f32 (exactly one vreg, one DMA):
#   rows 0..3 : lanes 0:8  = aw1[k]      lanes 8:16 = cw1[k]        (fused layer-1 rows)
#   row  4    : lanes 0:8  = ab1         lanes 8:16 = cb1           (fused bias row)
#   row  5    : lanes 0:8  = aw2[:, 0]   lanes 8:16 = cw1[4]        (critic action-weight row)
#   row  6    : lanes 0:8  = aw2[:, 1]   lanes 8:16 = cw2[:, 0]     (lane-aligned with hc)
#   row  7    : zeros
# Scalar biases [ab2[0], ab2[1], cb2] travel separately in a (3,) SMEM array.
# ----------------------------------------------------------------------------


def actor_critic_kernel(states_ref, u_ref, consts_ref, params_ref, out_ref):
    i = pl.program_id(0)
    P = params_ref[...]                                     # (8, 128) f32, VMEM-resident

    # ---- fused actor/critic layer 1 over full 128-lane rows -----------------
    # acc lanes 0:8  = ab1 + x @ aw1            (actor pre-activation)
    # acc lanes 8:16 = cb1 + x @ cw1[:4]        (critic pre-activation, sans action term)
    acc = P[4:5, :]                                         # fused bias row [ab1 | cb1]
    for k in range(STATE_DIM):
        acc = acc + states_ref[i * STATE_DIM + k] * P[k:k + 1, :]

    h = jnp.maximum(acc, 0.0)                               # actor h lives in lanes 0:8

    # ---- actor layer 2: logits = h @ aw2 + ab2 (scalar biases from SMEM) ----
    logit0 = jnp.sum(h[:, 0:8] * P[5:6, 0:8], axis=-1, keepdims=True) + consts_ref[0]
    logit1 = jnp.sum(h[:, 0:8] * P[6:7, 0:8], axis=-1, keepdims=True) + consts_ref[1]

    # softmax / sample / log_prob / entropy, all from logits (logsumexp form).
    m = jnp.maximum(logit0, logit1)
    e0 = jnp.exp(logit0 - m)
    e1 = jnp.exp(logit1 - m)
    z = e0 + e1
    inv_z = 1.0 / z                                         # one divide, two muls (exact)
    lse = m + jnp.log(z)
    logp0 = logit0 - lse
    logp1 = logit1 - lse
    p0 = e0 * inv_z
    p1 = e1 * inv_z

    # Categorical(probs).sample() via inverse CDF on the supplied uniform.
    u = u_ref[i]                                            # scalar from SMEM
    take1 = u >= p0                                         # (1,1) bool, action in {0,1}
    action_f = take1.astype(jnp.float32)                    # (1,1)
    logp = jnp.where(take1, logp1, logp0)                   # dist.log_prob(action)
    entropy = -(p0 * logp0 + p1 * logp1)                    # per-row entropy

    # ---- critic on cat([state, action]): lane-aligned slices at offset 8 ----
    hc = jnp.maximum(acc[:, 8:16] + action_f * P[5:6, 8:16], 0.0)
    value = jnp.sum(hc * P[6:7, 8:16], axis=-1, keepdims=True) + consts_ref[2]

    # ---- one lane-dense, sublane-full packed output block -------------------
    # lane 0: action (float), lane 1: logp, lane 2: value, lane 3: entropy.
    lane = lax.broadcasted_iota(jnp.int32, (1, 128), dimension=1)
    packed = jnp.where(lane == 0, action_f, 0.0)
    packed = jnp.where(lane == 1, logp, packed)
    packed = jnp.where(lane == 2, value, packed)
    packed = jnp.where(lane == 3, entropy, packed)
    out_ref[...] = jnp.broadcast_to(packed, (1, 8, 128))    # one unmasked full-tile store


@jax.jit
def actor_critic_forward(states, u, param_slab, consts):
    """states: (B,4) f32, u: (B,) f32 uniforms, param_slab: (8,128) f32, consts: (3,) f32."""
    B = states.shape[0]
    states_flat = states.reshape(B * STATE_DIM)             # 1-D SMEM (no 2-D padding)
    u_flat = u.reshape(B)

    out = pl.pallas_call(
        actor_critic_kernel,
        grid=(B,),
        in_specs=[
            pl.BlockSpec(memory_space=pltpu.MemorySpace.SMEM),   # states_flat (B*4,)
            pl.BlockSpec(memory_space=pltpu.MemorySpace.SMEM),   # u_flat (B,)
            pl.BlockSpec(memory_space=pltpu.MemorySpace.SMEM),   # [ab2_0, ab2_1, cb2]
            pl.BlockSpec((8, 128), lambda i: (0, 0)),            # param slab: DMA'd once, resident
        ],
        out_specs=pl.BlockSpec((1, 8, 128), lambda i: (i, 0, 0)),
        out_shape=jax.ShapeDtypeStruct((B, 8, 128), jnp.float32),
        compiler_params=pltpu.CompilerParams(dimension_semantics=("parallel",)),
    )(states_flat, u_flat, consts, param_slab)

    # Single-slice unpack (one gather), then split on host.
    cols = out[:, 0, :4]                                     # (B, 4)
    action = cols[:, 0].astype(jnp.int32)                    # (B,)   like dist.sample()
    log_prob = cols[:, 1]                                    # (B,)   dist.log_prob(action)
    value = cols[:, 2:3]                                     # (B,1)  critic output
    entropy = jnp.mean(cols[:, 3])                           # ()     dist.entropy().mean()
    return action, log_prob, value, entropy


def pack_params(params):
    """Pack the 8 parameter tensors into one (8, 128) f32 slab (one vreg, one DMA)."""
    aw1, ab1, aw2, ab2, cw1, cb1, cw2, cb2 = params
    P = jnp.zeros((8, 128), jnp.float32)
    P = P.at[0:4, 0:8].set(aw1)                      # actor L1 weight rows
    P = P.at[0:4, 8:16].set(cw1[0:4])                # critic L1 weight rows (state part)
    P = P.at[4, 0:8].set(ab1.reshape(HIDDEN))        # actor L1 bias
    P = P.at[4, 8:16].set(cb1.reshape(HIDDEN))       # critic L1 bias (fused bias row)
    P = P.at[5, 0:8].set(aw2[:, 0])                  # actor L2 weight, column 0
    P = P.at[5, 8:16].set(cw1[4])                    # critic action-weight row (lane-aligned)
    P = P.at[6, 0:8].set(aw2[:, 1])                  # actor L2 weight, column 1
    P = P.at[6, 8:16].set(cw2[:, 0])                 # critic L2 weight (lane-aligned with hc)
    return P


def pack_consts(params):
    """Scalar biases [ab2[0], ab2[1], cb2] as a tiny 1-D SMEM array."""
    _, _, _, ab2, _, _, _, cb2 = params
    return jnp.concatenate([ab2.reshape(N_ACTIONS), cb2.reshape(1)]).astype(jnp.float32)


def init_params(key):
    """Deterministic init mirroring the PyTorch module's init scheme.

    Weights are stored transposed w.r.t. torch (in_features, out_features) so the
    forward computes x @ W + b directly.
    """
    ks = jax.random.split(key, 8)
    # actor layer 1: kaiming_normal_(fan_in, relu) -> std = sqrt(2 / fan_in)
    aw1 = jax.random.normal(ks[0], (STATE_DIM, HIDDEN), jnp.float32) * (2.0 / STATE_DIM) ** 0.5
    ab1 = jax.random.uniform(ks[1], (1, HIDDEN), jnp.float32,
                             -1.0 / STATE_DIM ** 0.5, 1.0 / STATE_DIM ** 0.5)
    # actor layer 2: xavier_uniform_
    lim_a2 = (6.0 / (HIDDEN + N_ACTIONS)) ** 0.5
    aw2 = jax.random.uniform(ks[2], (HIDDEN, N_ACTIONS), jnp.float32, -lim_a2, lim_a2)
    ab2 = jax.random.uniform(ks[3], (1, N_ACTIONS), jnp.float32,
                             -1.0 / HIDDEN ** 0.5, 1.0 / HIDDEN ** 0.5)
    # critic layer 1: kaiming_normal_(fan_in = 5, relu)
    cin = STATE_DIM + 1
    cw1 = jax.random.normal(ks[4], (cin, HIDDEN), jnp.float32) * (2.0 / cin) ** 0.5
    cb1 = jax.random.uniform(ks[5], (1, HIDDEN), jnp.float32,
                             -1.0 / cin ** 0.5, 1.0 / cin ** 0.5)
    # critic layer 2: xavier_uniform_
    lim_c2 = (6.0 / (HIDDEN + 1)) ** 0.5
    cw2 = jax.random.uniform(ks[6], (HIDDEN, 1), jnp.float32, -lim_c2, lim_c2)
    cb2 = jax.random.uniform(ks[7], (1, 1), jnp.float32,
                             -1.0 / HIDDEN ** 0.5, 1.0 / HIDDEN ** 0.5)
    return (aw1, ab1, aw2, ab2, cw1, cb1, cw2, cb2)


def reference_forward(states, u, params):
    """Pure-JAX reference of the same forward semantics (silent sanity check)."""
    aw1, ab1, aw2, ab2, cw1, cb1, cw2, cb2 = params
    h = jax.nn.relu(states @ aw1 + ab1)
    logits = h @ aw2 + ab2
    probs = jax.nn.softmax(logits, axis=-1)
    action = (u >= probs[:, 0]).astype(jnp.int32)
    logp = jnp.log(probs[jnp.arange(states.shape[0]), action])
    ent = -(probs * jnp.log(probs)).sum(-1).mean()
    xa = jnp.concatenate([states, action[:, None].astype(jnp.float32)], axis=-1)
    hc = jax.nn.relu(xa @ cw1 + cb1)
    value = hc @ cw2 + cb2
    return action, logp, value, ent


if __name__ == "__main__":
    key = jax.random.PRNGKey(0)
    pkey, skey, ukey = jax.random.split(key, 3)

    params = init_params(pkey)
    param_slab = pack_params(params)          # packed once, reused across calls
    consts = pack_consts(params)

    # Batch of vector-env states; each row follows the module's batch-1 semantics.
    # TODO(synk): torch's Categorical.sample() uses internal RNG; here the sample is
    # driven by an explicit per-row uniform via inverse CDF.
    B = 8
    states = jax.random.normal(skey, (B, STATE_DIM), jnp.float32)
    u = jax.random.uniform(ukey, (B,), jnp.float32)

    actions, log_probs, values, entropy = actor_critic_forward(states, u, param_slab, consts)
    jax.block_until_ready((actions, log_probs, values, entropy))

    # Silent correctness check against the pure-JAX reference.
    ra, rl, rv, re = reference_forward(states, u, params)
    assert bool(jnp.all(actions == ra))
    assert bool(jnp.allclose(log_probs, rl, atol=1e-5, rtol=1e-5))
    assert bool(jnp.allclose(values, rv, atol=1e-5, rtol=1e-5))
    assert bool(jnp.allclose(entropy, re, atol=1e-5, rtol=1e-5))

    print("KERNEL_OK")
</pallas_src>

<mosaic_0001>
module attributes {stable_mosaic.version = 11 : i64} {
  func.func @actor_critic_kernel(%arg0: i32, %arg1: memref<32xf32, #tpu.memory_space<smem>>, %arg2: memref<8xf32, #tpu.memory_space<smem>>, %arg3: memref<3xf32, #tpu.memory_space<smem>>, %arg4: memref<8x128xf32, #tpu.memory_space<vmem>>, %arg5: memref<1x8x128xf32, #tpu.memory_space<vmem>>) attributes {dimension_semantics = [#tpu.dimension_semantics<parallel>], iteration_bounds = array<i64: 8>, scalar_prefetch = 0 : i64, scratch_operands = 0 : i64, tpu.core_type = #tpu.core_type<tc>, window_params = [{transform_indices = @transform_0, window_bounds = array<i64: 32>}, {transform_indices = @transform_1, window_bounds = array<i64: 8>}, {transform_indices = @transform_2, window_bounds = array<i64: 3>}, {pipeline_mode = #tpu.pipeline_mode<synchronous>, transform_indices = @transform_3, window_bounds = array<i64: 8, 128>}, {transform_indices = @transform_4, window_bounds = array<i64: 1, 8, 128>}]} {
    %c0 = arith.constant 0 : index
    %c0_0 = arith.constant 0 : index
    %0 = vector.load %arg4[%c0, %c0_0] : memref<8x128xf32, #tpu.memory_space<vmem>>, vector<8x128xf32>
    %1 = vector.extract_strided_slice %0 {offsets = [4, 0], sizes = [1, 128], strides = [1, 1]} : vector<8x128xf32> to vector<1x128xf32>
    %c4_i32 = arith.constant 4 : i32
    %2 = arith.muli %arg0, %c4_i32 : i32
    %c0_i32 = arith.constant 0 : i32
    %3 = arith.addi %2, %c0_i32 : i32
    %4 = arith.index_cast %3 : i32 to index
    %5 = memref.load %arg1[%4] : memref<32xf32, #tpu.memory_space<smem>>
    %6 = vector.extract_strided_slice %0 {offsets = [0, 0], sizes = [1, 128], strides = [1, 1]} : vector<8x128xf32> to vector<1x128xf32>
    %7 = vector.broadcast %5 : f32 to vector<1x128xf32>
    %8 = arith.mulf %7, %6 : vector<1x128xf32>
    %9 = arith.addf %1, %8 : vector<1x128xf32>
    %c4_i32_1 = arith.constant 4 : i32
    %10 = arith.muli %arg0, %c4_i32_1 : i32
    %c1_i32 = arith.constant 1 : i32
    %11 = arith.addi %10, %c1_i32 : i32
    %12 = arith.index_cast %11 : i32 to index
    %13 = memref.load %arg1[%12] : memref<32xf32, #tpu.memory_space<smem>>
    %14 = vector.extract_strided_slice %0 {offsets = [1, 0], sizes = [1, 128], strides = [1, 1]} : vector<8x128xf32> to vector<1x128xf32>
    %15 = vector.broadcast %13 : f32 to vector<1x128xf32>
    %16 = arith.mulf %15, %14 : vector<1x128xf32>
    %17 = arith.addf %9, %16 : vector<1x128xf32>
    %c4_i32_2 = arith.constant 4 : i32
    %18 = arith.muli %arg0, %c4_i32_2 : i32
    %c2_i32 = arith.constant 2 : i32
    %19 = arith.addi %18, %c2_i32 : i32
    %20 = arith.index_cast %19 : i32 to index
    %21 = memref.load %arg1[%20] : memref<32xf32, #tpu.memory_space<smem>>
    %22 = vector.extract_strided_slice %0 {offsets = [2, 0], sizes = [1, 128], strides = [1, 1]} : vector<8x128xf32> to vector<1x128xf32>
    %23 = vector.broadcast %21 : f32 to vector<1x128xf32>
    %24 = arith.mulf %23, %22 : vector<1x128xf32>
    %25 = arith.addf %17, %24 : vector<1x128xf32>
    %c4_i32_3 = arith.constant 4 : i32
    %26 = arith.muli %arg0, %c4_i32_3 : i32
    %c3_i32 = arith.constant 3 : i32
    %27 = arith.addi %26, %c3_i32 : i32
    %28 = arith.index_cast %27 : i32 to index
    %29 = memref.load %arg1[%28] : memref<32xf32, #tpu.memory_space<smem>>
    %30 = vector.extract_strided_slice %0 {offsets = [3, 0], sizes = [1, 128], strides = [1, 1]} : vector<8x128xf32> to vector<1x128xf32>
    %31 = vector.broadcast %29 : f32 to vector<1x128xf32>
    %32 = arith.mulf %31, %30 : vector<1x128xf32>
    %33 = arith.addf %25, %32 : vector<1x128xf32>
    %cst = arith.constant 0.000000e+00 : f32
    %34 = vector.broadcast %cst : f32 to vector<1x128xf32>
    %35 = arith.maximumf %33, %34 : vector<1x128xf32>
    %36 = vector.extract_strided_slice %35 {offsets = [0, 0], sizes = [1, 8], strides = [1, 1]} : vector<1x128xf32> to vector<1x8xf32>
    %37 = vector.extract_strided_slice %0 {offsets = [5, 0], sizes = [1, 8], strides = [1, 1]} : vector<8x128xf32> to vector<1x8xf32>
    %38 = arith.mulf %36, %37 : vector<1x8xf32>
    %cst_4 = arith.constant dense<0.000000e+00> : vector<1xf32>
    %39 = vector.multi_reduction <add>, %38, %cst_4 [1] : vector<1x8xf32> to vector<1xf32>
    %40 = vector.shape_cast %39 : vector<1xf32> to vector<1x1xf32>
    %c0_5 = arith.constant 0 : index
    %41 = memref.load %arg3[%c0_5] : memref<3xf32, #tpu.memory_space<smem>>
    %42 = vector.broadcast %41 : f32 to vector<1x1xf32>
    %43 = arith.addf %40, %42 : vector<1x1xf32>
    %44 = vector.extract_strided_slice %35 {offsets = [0, 0], sizes = [1, 8], strides = [1, 1]} : vector<1x128xf32> to vector<1x8xf32>
    %45 = vector.extract_strided_slice %0 {offsets = [6, 0], sizes = [1, 8], strides = [1, 1]} : vector<8x128xf32> to vector<1x8xf32>
    %46 = arith.mulf %44, %45 : vector<1x8xf32>
    %cst_6 = arith.constant dense<0.000000e+00> : vector<1xf32>
    %47 = vector.multi_reduction <add>, %46, %cst_6 [1] : vector<1x8xf32> to vector<1xf32>
    %48 = vector.shape_cast %47 : vector<1xf32> to vector<1x1xf32>
    %c1 = arith.constant 1 : index
    %49 = memref.load %arg3[%c1] : memref<3xf32, #tpu.memory_space<smem>>
    %50 = vector.broadcast %49 : f32 to vector<1x1xf32>
    %51 = arith.addf %48, %50 : vector<1x1xf32>
    %52 = arith.maximumf %43, %51 : vector<1x1xf32>
    %53 = arith.subf %43, %52 : vector<1x1xf32>
    %54 = math.exp %53 : vector<1x1xf32>
    %55 = arith.subf %51, %52 : vector<1x1xf32>
    %56 = math.exp %55 : vector<1x1xf32>
    %57 = arith.addf %54, %56 : vector<1x1xf32>
    %cst_7 = arith.constant 1.000000e+00 : f32
    %58 = vector.broadcast %cst_7 : f32 to vector<1x1xf32>
    %59 = arith.divf %58, %57 : vector<1x1xf32>
    %60 = math.log %57 : vector<1x1xf32>
    %61 = arith.addf %52, %60 : vector<1x1xf32>
    %62 = arith.subf %43, %61 : vector<1x1xf32>
    %63 = arith.subf %51, %61 : vector<1x1xf32>
    %64 = arith.mulf %54, %59 : vector<1x1xf32>
    %65 = arith.mulf %56, %59 : vector<1x1xf32>
    %66 = arith.index_cast %arg0 : i32 to index
    %67 = memref.load %arg2[%66] : memref<8xf32, #tpu.memory_space<smem>>
    %68 = vector.broadcast %67 : f32 to vector<1x1xf32>
    %69 = arith.cmpf oge, %68, %64 : vector<1x1xf32>
    %70 = arith.extui %69 : vector<1x1xi1> to vector<1x1xi32>
    %71 = arith.sitofp %70 : vector<1x1xi32> to vector<1x1xf32>
    %72 = arith.select %69, %63, %62 : vector<1x1xi1>, vector<1x1xf32>
    %73 = arith.mulf %64, %62 : vector<1x1xf32>
    %74 = arith.mulf %65, %63 : vector<1x1xf32>
    %75 = arith.addf %73, %74 : vector<1x1xf32>
    %cst_8 = arith.constant 0.000000e+00 : f32
    %76 = vector.broadcast %cst_8 : f32 to vector<1x1xf32>
    %77 = arith.subf %76, %75 : vector<1x1xf32>
    %78 = vector.extract_strided_slice %33 {offsets = [0, 8], sizes = [1, 8], strides = [1, 1]} : vector<1x128xf32> to vector<1x8xf32>
    %79 = vector.extract_strided_slice %0 {offsets = [5, 8], sizes = [1, 8], strides = [1, 1]} : vector<8x128xf32> to vector<1x8xf32>
    %80 = vector.broadcast %71 : vector<1x1xf32> to vector<1x8xf32>
    %81 = arith.mulf %80, %79 : vector<1x8xf32>
    %82 = arith.addf %78, %81 : vector<1x8xf32>
    %cst_9 = arith.constant 0.000000e+00 : f32
    %83 = vector.broadcast %cst_9 : f32 to vector<1x8xf32>
    %84 = arith.maximumf %82, %83 : vector<1x8xf32>
    %85 = vector.extract_strided_slice %0 {offsets = [6, 8], sizes = [1, 8], strides = [1, 1]} : vector<8x128xf32> to vector<1x8xf32>
    %86 = arith.mulf %84, %85 : vector<1x8xf32>
    %cst_10 = arith.constant dense<0.000000e+00> : vector<1xf32>
    %87 = vector.multi_reduction <add>, %86, %cst_10 [1] : vector<1x8xf32> to vector<1xf32>
    %88 = vector.shape_cast %87 : vector<1xf32> to vector<1x1xf32>
    %c2 = arith.constant 2 : index
    %89 = memref.load %arg3[%c2] : memref<3xf32, #tpu.memory_space<smem>>
    %90 = vector.broadcast %89 : f32 to vector<1x1xf32>
    %91 = arith.addf %88, %90 : vector<1x1xf32>
    %92 = tpu.iota {dimensions = array<i32: 1>} : vector<1x128xi32>
    %c0_i32_11 = arith.constant 0 : i32
    %93 = vector.broadcast %c0_i32_11 : i32 to vector<1x128xi32>
    %94 = arith.cmpi eq, %92, %93 : vector<1x128xi32>
    %cst_12 = arith.constant 0.000000e+00 : f32
    %95 = vector.shape_cast %71 : vector<1x1xf32> to vector<1x1xf32>
    %96 = vector.broadcast %95 : vector<1x1xf32> to vector<1x128xf32>
    %97 = vector.broadcast %cst_12 : f32 to vector<1x128xf32>
    %98 = arith.select %94, %96, %97 : vector<1x128xi1>, vector<1x128xf32>
    %c1_i32_13 = arith.constant 1 : i32
    %99 = vector.broadcast %c1_i32_13 : i32 to vector<1x128xi32>
    %100 = arith.cmpi eq, %92, %99 : vector<1x128xi32>
    %101 = vector.shape_cast %72 : vector<1x1xf32> to vector<1x1xf32>
    %102 = vector.broadcast %101 : vector<1x1xf32> to vector<1x128xf32>
    %103 = arith.select %100, %102, %98 : vector<1x128xi1>, vector<1x128xf32>
    %c2_i32_14 = arith.constant 2 : i32
    %104 = vector.broadcast %c2_i32_14 : i32 to vector<1x128xi32>
    %105 = arith.cmpi eq, %92, %104 : vector<1x128xi32>
    %106 = vector.shape_cast %91 : vector<1x1xf32> to vector<1x1xf32>
    %107 = vector.broadcast %106 : vector<1x1xf32> to vector<1x128xf32>
    %108 = arith.select %105, %107, %103 : vector<1x128xi1>, vector<1x128xf32>
    %c3_i32_15 = arith.constant 3 : i32
    %109 = vector.broadcast %c3_i32_15 : i32 to vector<1x128xi32>
    %110 = arith.cmpi eq, %92, %109 : vector<1x128xi32>
    %111 = vector.shape_cast %77 : vector<1x1xf32> to vector<1x1xf32>
    %112 = vector.broadcast %111 : vector<1x1xf32> to vector<1x128xf32>
    %113 = arith.select %110, %112, %108 : vector<1x128xi1>, vector<1x128xf32>
    %114 = vector.shape_cast %113 : vector<1x128xf32> to vector<1x1x128xf32>
    %115 = vector.broadcast %114 : vector<1x1x128xf32> to vector<1x8x128xf32>
    %c0_16 = arith.constant 0 : index
    %c0_17 = arith.constant 0 : index
    %c0_18 = arith.constant 0 : index
    %116 = vector.load %arg5[%c0_16, %c0_17, %c0_18] : memref<1x8x128xf32, #tpu.memory_space<vmem>>, vector<1x8x128xf32>
    tpu.vector_store %arg5[%c0_16, %c0_17, %c0_18], %115 {strides = array<i32>} : memref<1x8x128xf32, #tpu.memory_space<vmem>>, vector<1x8x128xf32>,
    return
  }
  func.func @transform_0(%arg0: i32) -> i32 {
    %c0_i32 = arith.constant 0 : i32
    %c0_i32_0 = arith.constant 0 : i32
    return %c0_i32 : i32
  }
  func.func @transform_1(%arg0: i32) -> i32 {
    %c0_i32 = arith.constant 0 : i32
    %c0_i32_0 = arith.constant 0 : i32
    return %c0_i32 : i32
  }
  func.func @transform_2(%arg0: i32) -> i32 {
    %c0_i32 = arith.constant 0 : i32
    %c0_i32_0 = arith.constant 0 : i32
    return %c0_i32 : i32
  }
  func.func @transform_3(%arg0: i32) -> (i32, i32) {
    %c0_i32 = arith.constant 0 : i32
    %c0_i32_0 = arith.constant 0 : i32
    %c0_i32_1 = arith.constant 0 : i32
    return %c0_i32, %c0_i32_0 : i32, i32
  }
  func.func @transform_4(%arg0: i32) -> (i32, i32, i32) {
    %c0_i32 = arith.constant 0 : i32
    %c0_i32_0 = arith.constant 0 : i32
    %c0_i32_1 = arith.constant 0 : i32
    return %arg0, %c0_i32, %c0_i32_0 : i32, i32, i32
  }
}

</mosaic_0001>

<llo_original>
// kernel: actor_critic_forward.1
$region0: #{actor_critic_forward.1}
  #allocation0 [shape = 'u32[]', space=smem, size = 0x4, offset = 0x4, fixed_abs, tag = 'smem constant byte address 0x4 - core index']
  #allocation1 [shape = 'u32[144,128]{1,0:T(1,128)}', space=vmem, size = 0x12000, scoped, tag = 'internal scratch']
  %s0 = inlined_call_operand.vmem [shape: f32[32], index: 0, kind: input, shape index: {}]
  %s1 = inlined_call_operand.vmem [shape: f32[8], index: 1, kind: input, shape index: {}]
  %s2 = inlined_call_operand.vmem [shape: f32[3], index: 2, kind: input, shape index: {}]
  %s3 = inlined_call_operand.vmem [shape: f32[8,128], index: 3, kind: input, shape index: {}]
  %s4 = inlined_call_operand.vmem [shape: f32[8,8,128], index: 4, kind: output, shape index: {}]
  %s5 = sld [smem:[#allocation0]]
  $region61: #{actor_critic_forward.1} parent=0
    _
  %s7 = ssub.s32 1, %s5
  %s8 = scalar_select 0, %s7, %s5
  $region1: #{actor_critic_forward.1} parent=0
    #allocation2 [shape = 'u8[512]{0}', space=smem, size = 0x200, scoped, tag = 'input window, operand 0, single buffered']
    #allocation3 [shape = 's32[2]{0}', space=sflag, size = 0x8, scoped, tag = 'scoped memory for actor_critic_forward.1']
    #allocation4 [shape = 'u8[512]{0}', space=smem, size = 0x200, scoped, tag = 'input window, operand 1, single buffered']
    #allocation5 [shape = 's32[1]{0}', space=sflag, size = 0x4, scoped, tag = 'scoped memory for actor_critic_forward.1']
    #allocation6 [shape = 'u8[512]{0}', space=smem, size = 0x200, scoped, tag = 'input window, operand 2, single buffered']
    %9 = vsyncpa [#allocation3], 0
    %10 = vsyncpa [#allocation5], 0
    loop: start=0, step=1, limit=10
    $region2: #{actor_critic_forward.1} parent=1 // loop_pre_header
      _
    $region3: #{actor_critic_forward.1} parent=1 // loop_header
      %s12 = sphi 0, %s16
      %p13 = scmp.ge.s32.totalorder %s12, 10
      %s20 = sphi 0, %s20
      %s22 = sphi 0, %s20
      %s23 = sphi 0, %s22
      %s37 = sphi 0, %s23
      %s41 = sphi 0, %s41
      %s43 = sphi 0, %s41
      %s44 = sphi 0, %s43
      %s58 = sphi 0, %s44
      %s62 = sphi 0, %s62
      %s64 = sphi 0, %s62
      %s65 = sphi 0, %s64
      %s79 = sphi 0, %s65
      %s83 = sphi 0, %s83
      %s85 = sphi 0, %s83
      %s86 = sphi 0, %s85
      %s100 = sphi 0, %s86
      %s106 = sphi 0, %s108
      %s109 = sphi 0, %s106
      %s110 = sphi 0, %s109
      %s126 = sphi 0, %s110
    $region4: #{actor_critic_forward.1} parent=1 // loop_header_branch
      %15 = sbr.rel (%p13) target = $region8
    $region5: #{actor_critic_forward.1} parent=1 // loop_body
      %s17 = ssub.s32 %s12, 1
      %s18 = ssub.s32 %s12, 2
      %s19 = sadd.s32 %s12, 1
      %s21 = sadd.s32 %s20, 1
      %p24 = scmp.eq.s32.totalorder %s12, 7
      %p25 = scmp.ne.s32.totalorder %s20, %s22
      %p26 = scmp.eq.s32.totalorder %s12, 0
      %p27 = por %p25, %p26
      %p28 = scmp.ne.s32.totalorder %s20, %s22
      %p29 = scmp.eq.s32.totalorder %s17, 7
      %p30 = por %p28, %p29
      %p31 = scmp.ne.s32.totalorder %s22, %s23
      %p32 = scmp.eq.s32.totalorder %s17, 0
      %p33 = por %p31, %p32
      %p34 = scmp.ne.s32.totalorder %s22, %s23
      %p35 = scmp.eq.s32.totalorder %s18, 7
      %p36 = por %p34, %p35
      %p38 = scmp.ne.s32.totalorder %s23, %s37
      %p39 = scmp.eq.s32.totalorder %s18, 0
      %p40 = por %p38, %p39
      %s42 = sadd.s32 %s41, 1
      %p45 = scmp.eq.s32.totalorder %s12, 7
      %p46 = scmp.ne.s32.totalorder %s41, %s43
      %p47 = scmp.eq.s32.totalorder %s12, 0
      %p48 = por %p46, %p47
      %p49 = scmp.ne.s32.totalorder %s41, %s43
      %p50 = scmp.eq.s32.totalorder %s17, 7
      %p51 = por %p49, %p50
      %p52 = scmp.ne.s32.totalorder %s43, %s44
      %p53 = scmp.eq.s32.totalorder %s17, 0
      %p54 = por %p52, %p53
      %p55 = scmp.ne.s32.totalorder %s43, %s44
      %p56 = scmp.eq.s32.totalorder %s18, 7
      %p57 = por %p55, %p56
      %p59 = scmp.ne.s32.totalorder %s44, %s58
      %p60 = scmp.eq.s32.totalorder %s18, 0
      %p61 = por %p59, %p60
      %s63 = sadd.s32 %s62, 1
      %p66 = scmp.eq.s32.totalorder %s12, 7
      %p67 = scmp.ne.s32.totalorder %s62, %s64
      %p68 = scmp.eq.s32.totalorder %s12, 0
      %p69 = por %p67, %p68
      %p70 = scmp.ne.s32.totalorder %s62, %s64
      %p71 = scmp.eq.s32.totalorder %s17, 7
      %p72 = por %p70, %p71
      %p73 = scmp.ne.s32.totalorder %s64, %s65
      %p74 = scmp.eq.s32.totalorder %s17, 0
      %p75 = por %p73, %p74
      %p76 = scmp.ne.s32.totalorder %s64, %s65
      %p77 = scmp.eq.s32.totalorder %s18, 7
      %p78 = por %p76, %p77
      %p80 = scmp.ne.s32.totalorder %s65, %s79
      %p81 = scmp.eq.s32.totalorder %s18, 0
      %p82 = por %p80, %p81
      %s84 = sadd.s32 %s83, 1
      %p87 = scmp.eq.s32.totalorder %s12, 7
      %p88 = scmp.ne.s32.totalorder %s83, %s85
      %p89 = scmp.eq.s32.totalorder %s12, 0
      %p90 = por %p88, %p89
      %p91 = scmp.ne.s32.totalorder %s83, %s85
      %p92 = scmp.eq.s32.totalorder %s17, 7
      %p93 = por %p91, %p92
      %p94 = scmp.ne.s32.totalorder %s85, %s86
      %p95 = scmp.eq.s32.totalorder %s17, 0
      %p96 = por %p94, %p95
      %p97 = scmp.ne.s32.totalorder %s85, %s86
      %p98 = scmp.eq.s32.totalorder %s18, 7
      %p99 = por %p97, %p98
      %p101 = scmp.ne.s32.totalorder %s86, %s100
      %p102 = scmp.eq.s32.totalorder %s18, 0
      %p103 = por %p101, %p102
      %s104 = ssub.s32 %s12, %s19
      %p105 = scmp.eq.s32.totalorder %s104, 0
      %s107 = sadd.s32 %s106, 1
      %s108 = scalar_select %p105, %s106, %s107
      %p111 = pneg %p105
      %p112 = scmp.eq.s32.totalorder %s12, 7
      %p113 = por %p111, %p112
      %p114 = scmp.ne.s32.totalorder %s106, %s109
      %p115 = scmp.eq.s32.totalorder %s12, 0
      %p116 = por %p114, %p115
      %p117 = scmp.ne.s32.totalorder %s106, %s109
      %p118 = scmp.eq.s32.totalorder %s17, 7
      %p119 = por %p117, %p118
      %p120 = scmp.ne.s32.totalorder %s109, %s110
      %p121 = scmp.eq.s32.totalorder %s17, 0
      %p122 = por %p120, %p121
      %p123 = scmp.ne.s32.totalorder %s109, %s110
      %p124 = scmp.eq.s32.totalorder %s18, 7
      %p125 = por %p123, %p124
      %p127 = scmp.ne.s32.totalorder %s110, %s126
      %p128 = scmp.eq.s32.totalorder %s18, 0
      %p129 = por %p127, %p128
      %p130 = scmp.le.s32.totalorder 1, %s12
      %p131 = scmp.lt.s32.totalorder %s12, 9
      %p132 = pnand %p130, %p131
      %p133 = pneg %p132
      // Predicated region
      $region9: #{actor_critic_forward.1} parent=5 // pred_check
        _
      $region10: #{actor_critic_forward.1} parent=5 // pred_check_branch
        %135 = sbr.rel (%p132) target = $region12
      $region11: #{actor_critic_forward.1} parent=5 // pred_region
        %s136 = ssub.s32 %s12, 1
        // Predicated region
        $region13: #{actor_critic_forward.1} parent=11 // pred_check
          %p137 = pneg %p33
        $region14: #{actor_critic_forward.1} parent=11 // pred_check_branch
          %139 = sbr.rel (%p137) target = $region16
        $region15: #{actor_critic_forward.1} parent=11 // pred_region
          %s141 = ssub.s32 16, 16
          %142 = vsyncadd [#allocation3], %s141
          %s144 = sshll.u32 %s0, 4
          %s145 = int_to_ptr.vmem [resolvable:$true] %s144
          %147 = dma.vmem_to_smem %s145, 16, [#allocation2], [#allocation3]
        $region16: #{actor_critic_forward.1} parent=11 // pred_fallthru
          _
        // Predicated region
        $region17: #{actor_critic_forward.1} parent=11 // pred_check
          %p148 = pneg %p54
        $region18: #{actor_critic_forward.1} parent=11 // pred_check_branch
          %150 = sbr.rel (%p148) target = $region20
        $region19: #{actor_critic_forward.1} parent=11 // pred_region
          %s152 = ssub.s32 16, 16
          %153 = vsyncadd [#allocation5], %s152
          %s155 = sshll.u32 %s1, 4
          %s156 = int_to_ptr.vmem [resolvable:$true] %s155
          %158 = dma.vmem_to_smem %s156, 16, [#allocation4], [#allocation5]
        $region20: #{actor_critic_forward.1} parent=11 // pred_fallthru
          _
        // Predicated region
        $region21: #{actor_critic_forward.1} parent=11 // pred_check
          %p159 = pneg %p75
        $region22: #{actor_critic_forward.1} parent=11 // pred_check_branch
          %161 = sbr.rel (%p159) target = $region24
        $region23: #{actor_critic_forward.1} parent=11 // pred_region
          %s163 = ssub.s32 16, 16
          %164 = vsyncadd [#allocation5], %s163
          %s166 = sshll.u32 %s2, 4
          %s167 = int_to_ptr.vmem [resolvable:$true] %s166
          %169 = dma.vmem_to_smem %s167, 16, [#allocation6], [#allocation5]
        $region24: #{actor_critic_forward.1} parent=11 // pred_fallthru
          _
        // Predicated region
        $region25: #{actor_critic_forward.1} parent=11 // pred_check
          %p170 = pneg %p96
        $region26: #{actor_critic_forward.1} parent=11 // pred_check_branch
          %172 = sbr.rel (%p170) target = $region28
        $region27: #{actor_critic_forward.1} parent=11 // pred_region
          _
        $region28: #{actor_critic_forward.1} parent=11 // pred_fallthru
          _
      $region12: #{actor_critic_forward.1} parent=5 // pred_fallthru
        _
      %p173 = scmp.lt.s32.totalorder %s12, 8
      // Predicated region
      $region29: #{actor_critic_forward.1} parent=5 // pred_check
        %p174 = pneg %p173
      $region30: #{actor_critic_forward.1} parent=5 // pred_check_branch
        %176 = sbr.rel (%p174) target = $region32
      $region31: #{actor_critic_forward.1} parent=5 // pred_region
        _
      $region32: #{actor_critic_forward.1} parent=5 // pred_fallthru
        _
      %p177 = scmp.le.s32.totalorder 1, %s12
      %p178 = scmp.lt.s32.totalorder %s12, 9
      %p179 = pnand %p177, %p178
      %p180 = pneg %p179
      // Predicated region
      $region33: #{actor_critic_forward.1} parent=5 // pred_check
        _
      $region34: #{actor_critic_forward.1} parent=5 // pred_check_branch
        %182 = sbr.rel (%p179) target = $region36
      $region35: #{actor_critic_forward.1} parent=5 // pred_region
        %s183 = ssub.s32 %s12, 1
        // Predicated region
        $region37: #{actor_critic_forward.1} parent=35 // pred_check
          %p184 = pneg %p33
        $region38: #{actor_critic_forward.1} parent=35 // pred_check_branch
          %186 = sbr.rel (%p184) target = $region40
        $region39: #{actor_critic_forward.1} parent=35 // pred_region
          %187 = dma.done [#allocation3], 16
        $region40: #{actor_critic_forward.1} parent=35 // pred_fallthru
          _
        // Predicated region
        $region41: #{actor_critic_forward.1} parent=35 // pred_check
          %p188 = pneg %p54
        $region42: #{actor_critic_forward.1} parent=35 // pred_check_branch
          %190 = sbr.rel (%p188) target = $region44
        $region43: #{actor_critic_forward.1} parent=35 // pred_region
          %191 = dma.done [#allocation5], 16
        $region44: #{actor_critic_forward.1} parent=35 // pred_fallthru
          _
        // Predicated region
        $region45: #{actor_critic_forward.1} parent=35 // pred_check
          %p192 = pneg %p75
        $region46: #{actor_critic_forward.1} parent=35 // pred_check_branch
          %194 = sbr.rel (%p192) target = $region48
        $region47: #{actor_critic_forward.1} parent=35 // pred_region
          %195 = dma.done [#allocation5], 16
        $region48: #{actor_critic_forward.1} parent=35 // pred_fallthru
          _
        %196 = sfence
        %p197 = pneg %p33
        %p198 = pneg %p30
        %p199 = pneg %p54
        %p200 = pneg %p51
        %p201 = pneg %p75
        %p202 = pneg %p72
        %p203 = pneg %p96
        %p204 = pneg %p93
        %p205 = pneg %p122
        %p206 = pneg %p119
        %p207 = scmp.lt.s32.totalorder %s17, 7
        %s208 = scalar_select %p207, %s17, 7
        %s209 = smul.addr %s208, 8
        %s210 = scalar_lea.vmem %s4, %s209
        %p211 = scmp.lt.s32.totalorder %s17, 7
        %s212 = scalar_select %p211, %s17, 7
        %s213 = smul.addr %s212, 8
        %s214 = scalar_lea.vmem %s4, %s213
        %v215 = vld [vmem:[%s3] sm:$0xff]
        %s216 = smul.u32 %s17, 4
        %s217 = sld [smem:[#allocation2 + %s216]]
        %v218 = vstv %s217
        %v219 = vmul.f32 %v218, %v215
        %v221 = vrot.slane %v219, 4
        %v223 = vadd.f32 %v215, %v221
        %s224 = sadd.s32 %s216, 1
        %s225 = sld [smem:[#allocation2 + %s224]]
        %v226 = vstv %s225
        %v227 = vmul.f32 %v226, %v215
        %v229 = vrot.slane %v227, 5
        %v231 = vadd.f32 %v223, %v229
        %s232 = sadd.s32 %s216, 2
        %s233 = sld [smem:[#allocation2 + %s232]]
        %v234 = vstv %s233
        %v235 = vmul.f32 %v234, %v215
        %v237 = vrot.slane %v235, 6
        %v239 = vadd.f32 %v231, %v237
        %s240 = sadd.s32 %s216, 3
        %s241 = sld [smem:[#allocation2 + %s240]]
        %v242 = vstv %s241
        %v243 = vmul.f32 %v242, %v215
        %v245 = vrot.slane %v243, 7
        %v247 = vadd.f32 %v239, %v245
        %v248 = vmax.f32 %v247, 0.0
        %v250 = vrot.slane %v215, 1
        %v252 = vmul.f32 %v248, %v250
        %vm253 = vcmask 61444
        %v254 = vsel %vm253, %v252, 0.0
        %255 = vadd.xlane.f32.xlu0 %v254
        %v256 = vpop.xlane.xlu0 %255
        %s257 = sld [smem:[#allocation6]]
        %v258 = vstv %s257
        %v259 = vadd.f32 %v256, %v258
        %v260 = vrot.slane %v215, 2
        %v262 = vmul.f32 %v248, %v260
        %v263 = vsel %vm253, %v262, 0.0
        %264 = vadd.xlane.f32.xlu0 %v263
        %v265 = vpop.xlane.xlu0 %264
        %s266 = sld [smem:[#allocation6 + $0x1]]
        %v267 = vstv %s266
        %v268 = vadd.f32 %v265, %v267
        %v269 = vmax.f32 %v259, %v268
        %v270 = vsub.f32 %v259, %v269
        %v271 = vmul.f32 %v270, 1.442695
        %v272 = vpow.pop %v271
        %v273 = vsub.f32 %v268, %v269
        %v274 = vmul.f32 %v273, 1.442695
        %v275 = vpow.pop %v274
        %v276 = vadd.f32 %v272, %v275
        %v277 = vrcp.pop %v276
        %v278 = vmul.f32 1.0, %v277
        %v279 = vlog2.pop %v276
        %v280 = vmul.f32 %v279, 0.6931472
        %v281 = vadd.f32 %v269, %v280
        %v282 = vsub.f32 %v259, %v281
        %v283 = vsub.f32 %v268, %v281
        %v284 = vmul.f32 %v272, %v278
        %v285 = vmul.f32 %v275, %v278
        %s286 = sld [smem:[#allocation4 + %s17]]
        %v287 = vstv %s286
        %vm288 = vcmp.ge.f32.partialorder %v287, %v284
        %v289 = vsel %vm288, 1, 0
        %v290 = vcvt.s32.f32 %v289
        %v291 = vsel %vm288, %v283, %v282
        %v292 = vmul.f32 %v284, %v282
        %v293 = vmul.f32 %v285, %v283
        %v294 = vadd.f32 %v292, %v293
        %v295 = vsub.f32 0.0, %v294
        %296 = vrot.lane.b32.xlu0 %v250, 120
        %v297 = vpop.permute.xlu0 %296
        %v299 = vmul.f32 %v290, %v297
        %301 = vrot.lane.b32.xlu0 %v299, 8
        %v302 = vpop.permute.xlu0 %301
        %v304 = vadd.f32 %v247, %v302
        %v305 = vmax.f32 %v304, 0.0
        %v306 = vmul.f32 %v305, %v260
        %308 = vrot.lane.b32.xlu0 %v306, 120
        %v309 = vpop.permute.xlu0 %308
        %v311 = vsel %vm253, %v309, 0.0
        %312 = vadd.xlane.f32.xlu0 %v311
        %v313 = vpop.xlane.xlu0 %312
        %s314 = sld [smem:[#allocation6 + $0x2]]
        %v315 = vstv %s314
        %v316 = vadd.f32 %v313, %v315
        %v317 = vlaneseq
        %v318 = vand.u32 %v317, 127
        %vm319 = vcmp.eq.s32.totalorder %v318, 0
        %v320 = vsel %vm319, %v290, 0.0
        %vm321 = vcmp.eq.s32.totalorder %v318, 1
        %v322 = vsel %vm321, %v291, %v320
        %vm323 = vcmp.eq.s32.totalorder %v318, 2
        %v324 = vsel %vm323, %v316, %v322
        %vm325 = vcmp.eq.s32.totalorder %v318, 3
        %v326 = vsel %vm325, %v295, %v324
        %v327 = vlaneseq
        %v328 = vshrl.u32 %v327, 7
        %v329 = vsub.s32 4, %v328
        %v330 = vrot.slane %v326, %v329
        %331 = vst [vmem:[%s214] sm:$0xff] %v330
        %p332 = scmp.lt.s32.totalorder %s17, 7
        %s333 = scalar_select %p332, %s17, 7
        %s334 = smul.addr %s333, 8
        %s335 = scalar_lea.vmem %s4, %s334
        // Predicated region
        $region49: #{actor_critic_forward.1} parent=35 // pred_check
          %p336 = pneg %p119
        $region50: #{actor_critic_forward.1} parent=35 // pred_check_branch
          %338 = sbr.rel (%p336) target = $region52
        $region51: #{actor_critic_forward.1} parent=35 // pred_region
          _
        $region52: #{actor_critic_forward.1} parent=35 // pred_fallthru
          _
      $region36: #{actor_critic_forward.1} parent=5 // pred_fallthru
        _
      %p339 = scmp.le.s32.totalorder 2, %s12
      // Predicated region
      $region53: #{actor_critic_forward.1} parent=5 // pred_check
        %p340 = pneg %p339
      $region54: #{actor_critic_forward.1} parent=5 // pred_check_branch
        %342 = sbr.rel (%p340) target = $region56
      $region55: #{actor_critic_forward.1} parent=5 // pred_region
        %s343 = ssub.s32 %s12, 2
        // Predicated region
        $region57: #{actor_critic_forward.1} parent=55 // pred_check
          %p344 = pneg %p125
        $region58: #{actor_critic_forward.1} parent=55 // pred_check_branch
          %346 = sbr.rel (%p344) target = $region60
        $region59: #{actor_critic_forward.1} parent=55 // pred_region
          %p347 = scmp.lt.s32.totalorder %s18, 7
          %s348 = scalar_select %p347, %s18, 7
          %s349 = smul.addr %s348, 8
          %s350 = scalar_lea.vmem %s4, %s349
        $region60: #{actor_critic_forward.1} parent=55 // pred_fallthru
          _
      $region56: #{actor_critic_forward.1} parent=5 // pred_fallthru
        _
    $region6: #{actor_critic_forward.1} parent=1 // loop_footer
      %s16 = sadd.s32 1, %s12
    $region7: #{actor_critic_forward.1} parent=1 // loop_footer_branch
      %11 = sbr.rel target = $region3
    $region8: #{actor_critic_forward.1} parent=1 // loop_exit
      _
    %351 = vsyncpa [#allocation3], 1
    %s352 = scalar_lea.sflag [#allocation3], 1
    %353 = vsyncpa %s352, 1
    %354 = vsyncpa [#allocation5], 1

</llo_original>
